<compile_context>
chip_gen: v7x
topology: tpu7x:2x2x1
jax: 0.10.0
libtpu: 0.0.40
codegen_flags: <defaults>
</compile_context>

<pallas_src>
import functools

import jax
import jax.numpy as jnp
from jax.experimental import pallas as pl
from jax.experimental.pallas import tpu as pltpu


_VMEM_LIMIT = 48 * 1024 * 1024      # fits v5e/v6e (128 MiB) and v7x (64 MiB) physical VMEM
_LN_EPS = 1e-5
_ROW_TILE_CAP = 256                  # 256-aligned tiles feed the full v6e/v7x MXU width


def _pick_tile(m, cap=_ROW_TILE_CAP):
    """Largest multiple of 8 that divides m and is <= cap; full m if not 8-divisible."""
    if m % 8 != 0:
        return m
    t = min(cap, m)
    t -= t % 8
    while m % t != 0:
        t -= 8
    return t


# ----------------------------- Pallas kernels ------------------------------ #

def _ln_matmul_kernel(x_ref, g_ref, bln_ref, w_ref, b_ref, o_ref, *, activation):
    """y = act(LayerNorm(x) @ W + b); LN stats in f32, matmul in bf16 w/ f32 accum."""
    x = x_ref[...].astype(jnp.float32)
    mu = jnp.mean(x, axis=-1, keepdims=True)
    xc = x - mu
    var = jnp.mean(xc * xc, axis=-1, keepdims=True)
    h = xc * jax.lax.rsqrt(var + _LN_EPS)
    h = h * g_ref[...] + bln_ref[...]
    y = jnp.dot(h.astype(jnp.bfloat16), w_ref[...],
                preferred_element_type=jnp.float32)
    y = y + b_ref[...]
    if activation == "gelu":
        # exact GELU (torch.nn.GELU default, erf form), computed in f32
        y = 0.5 * y * (1.0 + jax.lax.erf(y * jnp.float32(0.7071067811865476)))
    o_ref[...] = y.astype(o_ref.dtype)


def ln_matmul_bias(x, g, bln, w, b, activation=None, out_dtype=jnp.bfloat16):
    """act(LN(x) @ w + b); x:[M,K] f32, w:[K,N] bf16, g/bln:[K], b:[N]."""
    M, K = x.shape
    _, N = w.shape
    tm = _pick_tile(M)
    return pl.pallas_call(
        functools.partial(_ln_matmul_kernel, activation=activation),
        out_shape=jax.ShapeDtypeStruct((M, N), out_dtype),
        grid_spec=pltpu.PrefetchScalarGridSpec(
            num_scalar_prefetch=0,
            grid=(M // tm,),
            in_specs=[
                pl.BlockSpec((tm, K), lambda i: (i, 0)),
                pl.BlockSpec((1, K), lambda i: (0, 0)),
                pl.BlockSpec((1, K), lambda i: (0, 0)),
                pl.BlockSpec((K, N), lambda i: (0, 0)),
                pl.BlockSpec((1, N), lambda i: (0, 0)),
            ],
            out_specs=pl.BlockSpec((tm, N), lambda i: (i, 0)),
        ),
        compiler_params=pltpu.CompilerParams(
            dimension_semantics=("parallel",),
            vmem_limit_bytes=_VMEM_LIMIT),
    )(x, g.reshape(1, K), bln.reshape(1, K), w, b.reshape(1, N))


def _matmul_res_kernel(x_ref, w_ref, b_ref, r_ref, o_ref):
    """y = residual + x @ W + b (residual add fused into the producing matmul)."""
    y = jnp.dot(x_ref[...].astype(jnp.bfloat16), w_ref[...],
                preferred_element_type=jnp.float32)
    y = y + b_ref[...] + r_ref[...].astype(jnp.float32)
    o_ref[...] = y.astype(o_ref.dtype)


def matmul_bias_residual(x, w, b, res):
    """res + x @ w + b; x:[M,K] bf16/f32, w:[K,N] bf16, b:[N], res:[M,N] f32 -> f32."""
    M, K = x.shape
    _, N = w.shape
    tm = _pick_tile(M)
    return pl.pallas_call(
        _matmul_res_kernel,
        out_shape=jax.ShapeDtypeStruct((M, N), jnp.float32),
        grid_spec=pltpu.PrefetchScalarGridSpec(
            num_scalar_prefetch=0,
            grid=(M // tm,),
            in_specs=[
                pl.BlockSpec((tm, K), lambda i: (i, 0)),
                pl.BlockSpec((K, N), lambda i: (0, 0)),
                pl.BlockSpec((1, N), lambda i: (0, 0)),
                pl.BlockSpec((tm, N), lambda i: (i, 0)),
            ],
            out_specs=pl.BlockSpec((tm, N), lambda i: (i, 0)),
        ),
        compiler_params=pltpu.CompilerParams(
            dimension_semantics=("parallel",),
            vmem_limit_bytes=_VMEM_LIMIT),
    )(x, w, b.reshape(1, N), res)


def _layernorm_kernel(x_ref, g_ref, b_ref, o_ref):
    x = x_ref[...].astype(jnp.float32)
    mu = jnp.mean(x, axis=-1, keepdims=True)
    xc = x - mu
    var = jnp.mean(xc * xc, axis=-1, keepdims=True)
    y = xc * jax.lax.rsqrt(var + _LN_EPS)
    o_ref[...] = (y * g_ref[...] + b_ref[...]).astype(o_ref.dtype)


def layernorm(x, g, b):
    """Row-wise LayerNorm over last dim; x:[M,D] f32, g/b:[D]."""
    M, D = x.shape
    tm = _pick_tile(M)
    return pl.pallas_call(
        _layernorm_kernel,
        out_shape=jax.ShapeDtypeStruct((M, D), jnp.float32),
        grid_spec=pltpu.PrefetchScalarGridSpec(
            num_scalar_prefetch=0,
            grid=(M // tm,),
            in_specs=[
                pl.BlockSpec((tm, D), lambda i: (i, 0)),
                pl.BlockSpec((1, D), lambda i: (0, 0)),
                pl.BlockSpec((1, D), lambda i: (0, 0)),
            ],
            out_specs=pl.BlockSpec((tm, D), lambda i: (i, 0)),
        ),
        compiler_params=pltpu.CompilerParams(
            dimension_semantics=("parallel",),
            vmem_limit_bytes=_VMEM_LIMIT),
    )(x, g.reshape(1, D), b.reshape(1, D))


def _attn_kernel(qkv_ref, mask_ref, o_ref, *, heads, scale):
    """All heads of one batch element; QKV consumed in native [S, 3D] layout."""
    S, D3 = qkv_ref.shape[1], qkv_ref.shape[2]
    D = D3 // 3
    Dh = D // heads
    qkv = qkv_ref[0]                        # (S, 3D) bf16
    mask = mask_ref[...]                    # (S, S) f32 additive causal mask
    outs = []
    for h in range(heads):                  # static unroll over heads
        q = qkv[:, h * Dh:(h + 1) * Dh] * scale            # scale folded into q (bf16)
        k = qkv[:, D + h * Dh:D + (h + 1) * Dh]
        v = qkv[:, 2 * D + h * Dh:2 * D + (h + 1) * Dh]
        s = jax.lax.dot_general(q, k, (((1,), (1,)), ((), ())),
                                preferred_element_type=jnp.float32)
        s = s + mask
        m = jnp.max(s, axis=-1, keepdims=True)
        p = jnp.exp(s - m)
        denom = jnp.sum(p, axis=-1, keepdims=True)
        p = p * pl.reciprocal(denom, approx=True)          # EUP slot, frees VALU
        outs.append(jnp.dot(p.astype(v.dtype), v, preferred_element_type=jnp.float32))
    o_ref[0] = jnp.concatenate(outs, axis=-1).astype(o_ref.dtype)


def mha_attention(qkv, mask, heads, scale, out_dtype=jnp.bfloat16):
    """qkv:[B,S,3D] bf16, mask:[S,S] additive -> [B,S,D] (heads merged, no transposes)."""
    B, S, D3 = qkv.shape
    D = D3 // 3
    return pl.pallas_call(
        functools.partial(_attn_kernel, heads=heads, scale=scale),
        out_shape=jax.ShapeDtypeStruct((B, S, D), out_dtype),
        grid_spec=pltpu.PrefetchScalarGridSpec(
            num_scalar_prefetch=0,
            grid=(B,),
            in_specs=[
                pl.BlockSpec((1, S, D3), lambda b: (b, 0, 0)),
                pl.BlockSpec((S, S), lambda b: (0, 0)),
            ],
            out_specs=pl.BlockSpec((1, S, D), lambda b: (b, 0, 0)),
        ),
        compiler_params=pltpu.CompilerParams(
            dimension_semantics=("parallel",),
            vmem_limit_bytes=_VMEM_LIMIT),
    )(qkv, mask)


# ----------------------------- parameter setup ----------------------------- #

def init_text_encoder_params(key, *, vocab, seq, width, heads, layers, mlp, out_dim):
    keys = jax.random.split(key, 4 + 8 * layers)
    kiter = iter(keys)
    std = 0.02

    def rnd(shape, dtype=jnp.float32):
        return (jax.random.normal(next(kiter), shape, dtype=jnp.float32) * std).astype(dtype)

    params = {
        "token_embedding": rnd((vocab, width)),
        "positional_embedding": rnd((seq, width)),
        "lnf_g": jnp.ones((width,), jnp.float32),
        "lnf_b": jnp.zeros((width,), jnp.float32),
        "text_projection": rnd((width, out_dim), jnp.bfloat16),
        # open_clip build_causal_mask: -inf above diagonal (large finite neg is equivalent)
        "attn_mask": jnp.triu(jnp.full((seq, seq), -1e30, dtype=jnp.float32), k=1),
        "blocks": [],
    }
    for _ in range(layers):
        params["blocks"].append({
            "ln1_g": jnp.ones((width,), jnp.float32),
            "ln1_b": jnp.zeros((width,), jnp.float32),
            "in_proj_w": rnd((width, 3 * width), jnp.bfloat16),
            "in_proj_b": jnp.zeros((3 * width,), jnp.float32),
            "out_proj_w": rnd((width, width), jnp.bfloat16),
            "out_proj_b": jnp.zeros((width,), jnp.float32),
            "ln2_g": jnp.ones((width,), jnp.float32),
            "ln2_b": jnp.zeros((width,), jnp.float32),
            "fc_w": rnd((width, mlp), jnp.bfloat16),
            "fc_b": jnp.zeros((mlp,), jnp.float32),
            "proj_w": rnd((mlp, width), jnp.bfloat16),
            "proj_b": jnp.zeros((width,), jnp.float32),
        })
    cfg = dict(vocab=vocab, seq=seq, width=width, heads=heads,
               layers=layers, mlp=mlp, out_dim=out_dim)
    return params, cfg


# ------------------------------ forward pass -------------------------------- #

def text_encoder_forward(params, cfg, text, normalize=False):
    B, S = text.shape
    D = cfg["width"]
    H = cfg["heads"]
    Dh = D // H
    scale = 1.0 / (Dh ** 0.5)

    # token embedding gather + positional embedding (glue, plain JAX)
    x = params["token_embedding"][text] + params["positional_embedding"][None]   # (B,S,D)
    x2 = x.reshape(B * S, D).astype(jnp.float32)       # residual stream kept in f32
    mask = params["attn_mask"]

    for blk in params["blocks"]:
        # --- attention sub-block: x = x + out_proj(MHA(ln_1(x) @ W_qkv)) ---
        qkv = ln_matmul_bias(x2, blk["ln1_g"], blk["ln1_b"],
                             blk["in_proj_w"], blk["in_proj_b"])        # (B*S, 3D) bf16
        a = mha_attention(qkv.reshape(B, S, 3 * D), mask, H, scale)     # (B, S, D) bf16
        x2 = matmul_bias_residual(a.reshape(B * S, D),
                                  blk["out_proj_w"], blk["out_proj_b"], x2)

        # --- MLP sub-block: x = x + proj(GELU(ln_2(x) @ W_fc)) ---
        h = ln_matmul_bias(x2, blk["ln2_g"], blk["ln2_b"],
                           blk["fc_w"], blk["fc_b"], activation="gelu")  # (B*S, mlp) bf16
        x2 = matmul_bias_residual(h, blk["proj_w"], blk["proj_b"], x2)

    # final layernorm
    x2 = layernorm(x2, params["lnf_g"], params["lnf_b"])
    x = x2.reshape(B, S, D)

    # pooled = x[arange(B), text.argmax(-1)] (EOT position) and tiny projection: plain JAX
    # (M = B rows is below one sublane tile; kernel launch overhead would dominate)
    eot = jnp.argmax(text, axis=-1)
    pooled = x[jnp.arange(B), eot]                                      # (B, D)
    out = pooled @ params["text_projection"].astype(jnp.float32)        # (B, out_dim)

    if normalize:
        out = out / jnp.linalg.norm(out, axis=-1, keepdims=True)
    return out


# ---------------------------------- main ------------------------------------ #

if __name__ == "__main__":
    VOCAB, SEQ, WIDTH, HEADS, LAYERS, MLP, OUT_DIM = 64, 16, 64, 4, 2, 256, 32
    B = 2

    key = jax.random.PRNGKey(0)
    pkey, tkey = jax.random.split(key)
    params, cfg = init_text_encoder_params(
        pkey, vocab=VOCAB, seq=SEQ, width=WIDTH, heads=HEADS,
        layers=LAYERS, mlp=MLP, out_dim=OUT_DIM)

    # deterministic token ids: body tokens in [1, VOCAB-2], EOT (= VOCAB-1, the argmax
    # token, as in CLIP tokenization) placed mid/end of each sequence, zero padding after.
    body = jax.random.randint(tkey, (B, SEQ), 1, VOCAB - 1, dtype=jnp.int32)
    pos = jnp.arange(SEQ)[None, :]
    eot_pos = jnp.array([[9], [15]], dtype=jnp.int32)
    text = jnp.where(pos == eot_pos, VOCAB - 1, jnp.where(pos > eot_pos, 0, body))
    text = text.astype(jnp.int32)

    out = text_encoder_forward(params, cfg, text, normalize=False)
    out = jax.block_until_ready(out)
    assert out.shape == (B, OUT_DIM)
    assert bool(jnp.all(jnp.isfinite(out)))
    print("KERNEL_OK")
</pallas_src>

<mosaic_0001>
module attributes {stable_mosaic.version = 11 : i64} {
  func.func @_ln_matmul_kernel(%arg0: i32, %arg1: memref<32x64xf32, #tpu.memory_space<vmem>>, %arg2: memref<1x64xf32, #tpu.memory_space<vmem>>, %arg3: memref<1x64xf32, #tpu.memory_space<vmem>>, %arg4: memref<64x192xbf16, #tpu.memory_space<vmem>>, %arg5: memref<1x192xf32, #tpu.memory_space<vmem>>, %arg6: memref<32x192xbf16, #tpu.memory_space<vmem>>) attributes {dimension_semantics = [#tpu.dimension_semantics<parallel>], iteration_bounds = array<i64: 1>, scalar_prefetch = 0 : i64, scratch_operands = 0 : i64, tpu.core_type = #tpu.core_type<tc>, window_params = [{transform_indices = @transform_0, window_bounds = array<i64: 32, 64>}, {pipeline_mode = #tpu.pipeline_mode<synchronous>, transform_indices = @transform_1, window_bounds = array<i64: 1, 64>}, {pipeline_mode = #tpu.pipeline_mode<synchronous>, transform_indices = @transform_2, window_bounds = array<i64: 1, 64>}, {pipeline_mode = #tpu.pipeline_mode<synchronous>, transform_indices = @transform_3, window_bounds = array<i64: 64, 192>}, {pipeline_mode = #tpu.pipeline_mode<synchronous>, transform_indices = @transform_4, window_bounds = array<i64: 1, 192>}, {transform_indices = @transform_5, window_bounds = array<i64: 32, 192>}]} {
    %c0 = arith.constant 0 : index
    %c0_0 = arith.constant 0 : index
    %0 = vector.load %arg1[%c0, %c0_0] : memref<32x64xf32, #tpu.memory_space<vmem>>, vector<32x64xf32>
    %cst = arith.constant dense<0.000000e+00> : vector<32xf32>
    %1 = vector.multi_reduction <add>, %0, %cst [1] : vector<32x64xf32> to vector<32xf32>
    %2 = vector.shape_cast %1 : vector<32xf32> to vector<32x1xf32>
    %cst_1 = arith.constant 6.400000e+01 : f32
    %3 = vector.broadcast %cst_1 : f32 to vector<32x1xf32>
    %4 = arith.divf %2, %3 : vector<32x1xf32>
    %5 = vector.broadcast %4 : vector<32x1xf32> to vector<32x64xf32>
    %6 = arith.subf %0, %5 : vector<32x64xf32>
    %7 = arith.mulf %6, %6 : vector<32x64xf32>
    %cst_2 = arith.constant dense<0.000000e+00> : vector<32xf32>
    %8 = vector.multi_reduction <add>, %7, %cst_2 [1] : vector<32x64xf32> to vector<32xf32>
    %9 = vector.shape_cast %8 : vector<32xf32> to vector<32x1xf32>
    %cst_3 = arith.constant 6.400000e+01 : f32
    %10 = vector.broadcast %cst_3 : f32 to vector<32x1xf32>
    %11 = arith.divf %9, %10 : vector<32x1xf32>
    %cst_4 = arith.constant 9.99999974E-6 : f32
    %12 = vector.broadcast %cst_4 : f32 to vector<32x1xf32>
    %13 = arith.addf %11, %12 : vector<32x1xf32>
    %14 = math.rsqrt %13 : vector<32x1xf32>
    %15 = vector.broadcast %14 : vector<32x1xf32> to vector<32x64xf32>
    %16 = arith.mulf %6, %15 : vector<32x64xf32>
    %c0_5 = arith.constant 0 : index
    %c0_6 = arith.constant 0 : index
    %17 = vector.load %arg2[%c0_5, %c0_6] : memref<1x64xf32, #tpu.memory_space<vmem>>, vector<1x64xf32>
    %18 = vector.broadcast %17 : vector<1x64xf32> to vector<32x64xf32>
    %19 = arith.mulf %16, %18 : vector<32x64xf32>
    %c0_7 = arith.constant 0 : index
    %c0_8 = arith.constant 0 : index
    %20 = vector.load %arg3[%c0_7, %c0_8] : memref<1x64xf32, #tpu.memory_space<vmem>>, vector<1x64xf32>
    %21 = vector.broadcast %20 : vector<1x64xf32> to vector<32x64xf32>
    %22 = arith.addf %19, %21 : vector<32x64xf32>
    %23 = arith.truncf %22 : vector<32x64xf32> to vector<32x64xbf16>
    %c0_9 = arith.constant 0 : index
    %c0_10 = arith.constant 0 : index
    %24 = vector.load %arg4[%c0_9, %c0_10] : memref<64x192xbf16, #tpu.memory_space<vmem>>, vector<64x192xbf16>
    %cst_11 = arith.constant dense<0.000000e+00> : vector<32x192xf32>
    %25 = tpu.matmul %23, %24, %cst_11 {dimension_numbers = #tpu.dot_dimension_numbers<[1], [0], [0], [1], [0, 0, 1, 1], [], []>} : vector<32x64xbf16>, vector<64x192xbf16>, vector<32x192xf32> -> vector<32x192xf32>
    %c0_12 = arith.constant 0 : index
    %c0_13 = arith.constant 0 : index
    %26 = vector.load %arg5[%c0_12, %c0_13] : memref<1x192xf32, #tpu.memory_space<vmem>>, vector<1x192xf32>
    %27 = vector.broadcast %26 : vector<1x192xf32> to vector<32x192xf32>
    %28 = arith.addf %25, %27 : vector<32x192xf32>
    %29 = arith.truncf %28 : vector<32x192xf32> to vector<32x192xbf16>
    %c0_14 = arith.constant 0 : index
    %c0_15 = arith.constant 0 : index
    %30 = vector.load %arg6[%c0_14, %c0_15] : memref<32x192xbf16, #tpu.memory_space<vmem>>, vector<32x192xbf16>
    tpu.vector_store %arg6[%c0_14, %c0_15], %29 {strides = array<i32>} : memref<32x192xbf16, #tpu.memory_space<vmem>>, vector<32x192xbf16>,
    return
  }
  func.func @transform_0(%arg0: i32) -> (i32, i32) {
    %c0_i32 = arith.constant 0 : i32
    %c0_i32_0 = arith.constant 0 : i32
    return %arg0, %c0_i32 : i32, i32
  }
  func.func @transform_1(%arg0: i32) -> (i32, i32) {
    %c0_i32 = arith.constant 0 : i32
    %c0_i32_0 = arith.constant 0 : i32
    %c0_i32_1 = arith.constant 0 : i32
    return %c0_i32, %c0_i32_0 : i32, i32
  }
  func.func @transform_2(%arg0: i32) -> (i32, i32) {
    %c0_i32 = arith.constant 0 : i32
    %c0_i32_0 = arith.constant 0 : i32
    %c0_i32_1 = arith.constant 0 : i32
    return %c0_i32, %c0_i32_0 : i32, i32
  }
  func.func @transform_3(%arg0: i32) -> (i32, i32) {
    %c0_i32 = arith.constant 0 : i32
    %c0_i32_0 = arith.constant 0 : i32
    %c0_i32_1 = arith.constant 0 : i32
    return %c0_i32, %c0_i32_0 : i32, i32
  }
  func.func @transform_4(%arg0: i32) -> (i32, i32) {
    %c0_i32 = arith.constant 0 : i32
    %c0_i32_0 = arith.constant 0 : i32
    %c0_i32_1 = arith.constant 0 : i32
    return %c0_i32, %c0_i32_0 : i32, i32
  }
  func.func @transform_5(%arg0: i32) -> (i32, i32) {
    %c0_i32 = arith.constant 0 : i32
    %c0_i32_0 = arith.constant 0 : i32
    return %arg0, %c0_i32 : i32, i32
  }
}

</mosaic_0001>

<llo_original>
// kernel: tpu_custom_call.1
$region0: #{tpu_custom_call.1}
  #allocation0 [shape = 'u32[]', space=smem, size = 0x4, offset = 0x4, fixed_abs, tag = 'smem constant byte address 0x4 - core index']
  #allocation1 [shape = 'u32[144,128]{1,0:T(1,128)}', space=vmem, size = 0x12000, scoped, tag = 'internal scratch']
  %s0 = inlined_call_operand.hbm [shape: f32[32,64], index: 0, kind: input, shape index: {}]
  %s1 = inlined_call_operand.vmem [shape: f32[1,64], index: 1, kind: input, shape index: {}]
  %s2 = inlined_call_operand.vmem [shape: f32[1,64], index: 2, kind: input, shape index: {}]
  %s3 = inlined_call_operand.hbm [shape: bf16[64,192], index: 3, kind: input, shape index: {}]
  %s4 = inlined_call_operand.vmem [shape: f32[1,192], index: 4, kind: input, shape index: {}]
  %s5 = inlined_call_operand.hbm [shape: bf16[32,192], index: 5, kind: output, shape index: {}]
  %s6 = sld [smem:[#allocation0]]
  $region38: #{tpu_custom_call.1} parent=0
    _
  %s8 = ssub.s32 1, %s6
  %s9 = scalar_select 0, %s8, %s6
  $region1: #{tpu_custom_call.1} parent=0
    #allocation2 [shape = 'u8[16384]{0}', space=vmem, size = 0x4000, scoped, tag = 'input window, operand 0, single buffered']
    #allocation3 [shape = 's32[1]{0}', space=sflag, size = 0x4, scoped, tag = 'scoped memory for tpu_custom_call.1']
    #allocation4 [shape = 's32[1]{0}', space=sflag, size = 0x4, scoped, tag = 'scoped memory for tpu_custom_call.1']
    #allocation5 [shape = 'u8[32768]{0}', space=vmem, size = 0x8000, scoped, tag = 'input window, operand 3, single buffered']
    #allocation6 [shape = 's32[1]{0}', space=sflag, size = 0x4, scoped, tag = 'scoped memory for tpu_custom_call.1']
    #allocation7 [shape = 'u8[16384]{0}', space=vmem, size = 0x4000, scoped, tag = 'output window, operand 0, single buffered']
    %10 = vsyncpa [#allocation3], 0
    %11 = vsyncpa [#allocation6], 0
    %12 = vsyncpa [#allocation4], 0
    // Predicated region
    $region2: #{tpu_custom_call.1} parent=1 // pred_check
      _
    $region3: #{tpu_custom_call.1} parent=1 // pred_check_branch
      %14 = sbr.rel (0) target = $region5
    $region4: #{tpu_custom_call.1} parent=1 // pred_region
      %s16 = ssub.s32 512, 512
      %17 = vsyncadd [#allocation3], %s16
      %s18 = sshll.u32 [#allocation2], 4
      %s19 = int_to_ptr.vmem [resolvable:$true] %s18
      %24 = dma.hbm_to_vmem [thread:$0]  %s0, 512, %s19, [#allocation3], 128, 128, 8
    $region5: #{tpu_custom_call.1} parent=1 // pred_fallthru
      _
    // Predicated region
    $region6: #{tpu_custom_call.1} parent=1 // pred_check
      _
    $region7: #{tpu_custom_call.1} parent=1 // pred_check_branch
      %26 = sbr.rel (0) target = $region9
    $region8: #{tpu_custom_call.1} parent=1 // pred_region
      _
    $region9: #{tpu_custom_call.1} parent=1 // pred_fallthru
      _
    // Predicated region
    $region10: #{tpu_custom_call.1} parent=1 // pred_check
      _
    $region11: #{tpu_custom_call.1} parent=1 // pred_check_branch
      %28 = sbr.rel (0) target = $region13
    $region12: #{tpu_custom_call.1} parent=1 // pred_region
      _
    $region13: #{tpu_custom_call.1} parent=1 // pred_fallthru
      _
    // Predicated region
    $region14: #{tpu_custom_call.1} parent=1 // pred_check
      _
    $region15: #{tpu_custom_call.1} parent=1 // pred_check_branch
      %30 = sbr.rel (0) target = $region17
    $region16: #{tpu_custom_call.1} parent=1 // pred_region
      %s32 = ssub.s32 1024, 1024
      %33 = vsyncadd [#allocation6], %s32
      %s34 = sshll.u32 [#allocation5], 4
      %s35 = int_to_ptr.vmem [resolvable:$true] %s34
      %40 = dma.hbm_to_vmem [thread:$0]  %s3, 1024, %s35, [#allocation6], 128, 128, 8
    $region17: #{tpu_custom_call.1} parent=1 // pred_fallthru
      _
    // Predicated region
    $region18: #{tpu_custom_call.1} parent=1 // pred_check
      _
    $region19: #{tpu_custom_call.1} parent=1 // pred_check_branch
      %42 = sbr.rel (0) target = $region21
    $region20: #{tpu_custom_call.1} parent=1 // pred_region
      _
    $region21: #{tpu_custom_call.1} parent=1 // pred_fallthru
      _
    // Predicated region
    $region22: #{tpu_custom_call.1} parent=1 // pred_check
      _
    $region23: #{tpu_custom_call.1} parent=1 // pred_check_branch
      %44 = sbr.rel (0) target = $region25
    $region24: #{tpu_custom_call.1} parent=1 // pred_region
      %45 = dma.done [#allocation3], 512
    $region25: #{tpu_custom_call.1} parent=1 // pred_fallthru
      _
    // Predicated region
    $region26: #{tpu_custom_call.1} parent=1 // pred_check
      _
    $region27: #{tpu_custom_call.1} parent=1 // pred_check_branch
      %47 = sbr.rel (0) target = $region29
    $region28: #{tpu_custom_call.1} parent=1 // pred_region
      %48 = dma.done [#allocation6], 1024
    $region29: #{tpu_custom_call.1} parent=1 // pred_fallthru
      _
    %v50 = vld [vmem:[#allocation2] sm:$0xff]
    %v51 = vld [vmem:[#allocation2 + $0x8] sm:$0xff]
    %v52 = vld [vmem:[#allocation2 + $0x10] sm:$0xff]
    %v53 = vld [vmem:[#allocation2 + $0x18] sm:$0xff]
    %vm54 = vcmask 523264
    %v55 = vsel %vm54, %v50, 0.0
    %56 = vadd.xlane.f32.xlu0 %v55
    %v57 = vpop.xlane.xlu0 %56
    %v58 = vsel %vm54, %v51, 0.0
    %59 = vadd.xlane.f32.xlu0 %v58
    %v60 = vpop.xlane.xlu0 %59
    %v61 = vsel %vm54, %v52, 0.0
    %62 = vadd.xlane.f32.xlu0 %v61
    %v63 = vpop.xlane.xlu0 %62
    %v64 = vsel %vm54, %v53, 0.0
    %65 = vadd.xlane.f32.xlu0 %v64
    %v66 = vpop.xlane.xlu0 %65
    %v67 = vrcp.pop 64.0
    %v68 = vmul.f32 %v57, %v67
    %v69 = vmul.f32 %v60, %v67
    %v70 = vmul.f32 %v63, %v67
    %v71 = vmul.f32 %v66, %v67
    %v72 = vsub.f32 %v50, %v68
    %v73 = vsub.f32 %v51, %v69
    %v74 = vsub.f32 %v52, %v70
    %v75 = vsub.f32 %v53, %v71
    %v76 = vmul.f32 %v72, %v72
    %v77 = vmul.f32 %v73, %v73
    %v78 = vmul.f32 %v74, %v74
    %v79 = vmul.f32 %v75, %v75
    %v80 = vsel %vm54, %v76, 0.0
    %81 = vadd.xlane.f32.xlu0 %v80
    %v82 = vpop.xlane.xlu0 %81
    %v83 = vsel %vm54, %v77, 0.0
    %84 = vadd.xlane.f32.xlu0 %v83
    %v85 = vpop.xlane.xlu0 %84
    %v86 = vsel %vm54, %v78, 0.0
    %87 = vadd.xlane.f32.xlu0 %v86
    %v88 = vpop.xlane.xlu0 %87
    %v89 = vsel %vm54, %v79, 0.0
    %90 = vadd.xlane.f32.xlu0 %v89
    %v91 = vpop.xlane.xlu0 %90
    %v92 = vmul.f32 %v82, %v67
    %v93 = vmul.f32 %v85, %v67
    %v94 = vmul.f32 %v88, %v67
    %v95 = vmul.f32 %v91, %v67
    %v96 = vadd.f32 %v92, 1e-05
    %v97 = vadd.f32 %v93, 1e-05
    %v98 = vadd.f32 %v94, 1e-05
    %v99 = vadd.f32 %v95, 1e-05
    %v100 = vrsqrt.pop %v96
    %v101 = vrsqrt.pop %v97
    %v102 = vrsqrt.pop %v98
    %v103 = vrsqrt.pop %v99
    %v104 = vmul.f32 %v72, %v100
    %v105 = vmul.f32 %v73, %v101
    %v106 = vmul.f32 %v74, %v102
    %v107 = vmul.f32 %v75, %v103
    %v108 = vld [vmem:[%s1] sm:$0x1]
    %v110 = vlaneseq
    %v111 = vshrl.u32 %v110, 7
    %v112 = vsub.s32 0, %v111
    %v113 = vrot.slane %v108, %v112
    %v115 = vmul.f32 %v104, %v113
    %v116 = vmul.f32 %v105, %v113
    %v117 = vmul.f32 %v106, %v113
    %v118 = vmul.f32 %v107, %v113
    %v119 = vld [vmem:[%s2] sm:$0x1]
    %v121 = vlaneseq
    %v122 = vshrl.u32 %v121, 7
    %v123 = vsub.s32 0, %v122
    %v124 = vrot.slane %v119, %v123
    %v126 = vadd.f32 %v115, %v124
    %v127 = vadd.f32 %v116, %v124
    %v128 = vadd.f32 %v117, %v124
    %v129 = vadd.f32 %v118, %v124
    %v130 = vpack.c.bf16 %v127, %v126
    %v131 = vpack.c.bf16 %v129, %v128
    %v132 = vld [vmem:[#allocation5] sm:$0xff]
    %v133 = vld [vmem:[#allocation5 + $0x8] sm:$0xff]
    %v134 = vld [vmem:[#allocation5 + $0x10] sm:$0xff]
    %v135 = vld [vmem:[#allocation5 + $0x18] sm:$0xff]
    %v136 = vld [vmem:[#allocation5 + $0x20] sm:$0xff]
    %v137 = vld [vmem:[#allocation5 + $0x28] sm:$0xff]
    %v138 = vld [vmem:[#allocation5 + $0x30] sm:$0xff]
    %v139 = vld [vmem:[#allocation5 + $0x38] sm:$0xff]
    %v140 = vld [vmem:[%s4] sm:$0x3]
    %v142 = vlaneseq
    %v143 = vshrl.u32 %v142, 7
    %v144 = vsub.s32 0, %v143
    %v145 = vrot.slane %v140, %v144
    %v146 = vlaneseq
    %v147 = vshrl.u32 %v146, 7
    %v148 = vsub.s32 1, %v147
    %v149 = vrot.slane %v140, %v148
    %v160 = vunpack.c.l.b16 %v132
    %v161 = vunpack.c.h.b16 %v132
    %v162 = vunpack.c.l.b16 %v133
    %v163 = vunpack.c.h.b16 %v133
    %v164 = vunpack.c.l.b16 %v134
    %v165 = vunpack.c.h.b16 %v134
    %v166 = vunpack.c.l.b16 %v135
    %v167 = vunpack.c.h.b16 %v135
    %v168 = vunpack.c.l.b16 %v136
    %v169 = vunpack.c.h.b16 %v136
    %v170 = vunpack.c.l.b16 %v137
    %v171 = vunpack.c.h.b16 %v137
    %v172 = vunpack.c.l.b16 %v138
    %v173 = vunpack.c.h.b16 %v138
    %v174 = vunpack.c.l.b16 %v139
    %v175 = vunpack.c.h.b16 %v139
    %v176 = vpack.c.b16 %v162, %v160
    %v177 = vpack.c.b16 %v163, %v161
    %v178 = vpack.c.b16 %v166, %v164
    %v179 = vpack.c.b16 %v167, %v165
    %v180 = vpack.c.b16 %v170, %v168
    %v181 = vpack.c.b16 %v171, %v169
    %v182 = vpack.c.b16 %v174, %v172
    %v183 = vpack.c.b16 %v175, %v173
    %v193 = vsel %vm54, %v130, 0
    %v196 = vsel %vm54, %v131, 0
    %198 = vmatprep.subr.bf16.mxu0 %v177
    %199 = vmatpush1.bf16.msra.mxu0 %v176
    %200 = vmatprep.subr.bf16.mxu0 %v179
    %201 = vmatpush1.bf16.msra.mxu0 %v178
    %202 = vmatprep.subr.bf16.mxu0 %v181
    %203 = vmatpush1.bf16.msra.mxu0 %v180
    %204 = vmatprep.subr.bf16.mxu0 %v183
    %205 = vmatpush1.bf16.msra.mxu0 %v182
    %206 = vmatprep.subr.bf16.mxu0 0
    %207 = vmatpush1.bf16.msra.mxu0 0
    %208 = vmatprep.subr.bf16.mxu0 0
    %209 = vmatpush1.bf16.msra.mxu0 0
    %210 = vmatprep.subr.bf16.mxu0 0
    %211 = vmatpush1.bf16.msra.mxu0 0
    %212 = vmatprep.subr.bf16.mxu0 0
    %213 = vmatpush1.bf16.msra.mxu0 0
    %214 = vmatprep.subr.bf16.mxu0 0
    %215 = vmatpush1.bf16.msra.mxu0 0
    %216 = vmatprep.subr.bf16.mxu0 0
    %217 = vmatpush1.bf16.msra.mxu0 0
    %218 = vmatprep.subr.bf16.mxu0 0
    %219 = vmatpush1.bf16.msra.mxu0 0
    %220 = vmatprep.subr.bf16.mxu0 0
    %221 = vmatpush1.bf16.msra.mxu0 0
    %222 = vmatprep.subr.bf16.mxu0 0
    %223 = vmatpush1.bf16.msra.mxu0 0
    %224 = vmatprep.subr.bf16.mxu0 0
    %225 = vmatpush1.bf16.msra.mxu0 0
    %226 = vmatprep.subr.bf16.mxu0 0
    %227 = vmatpush1.bf16.msra.mxu0 0
    %228 = vmatprep.subr.bf16.mxu0 0
    %229 = vmatpush1.bf16.msra.mxu0 0
    %230 = vmatprep.mubr.bf16.mxu0 0
    %231 = vmatmul.mubr.bf16.gmra.mrb[0].mxu0 %v193
    %v232 = vpop.f32.mrb[0].mxu0
    %v233 = vadd.f32 %v145, %v232
    %v234 = vpop.f32.mrb[0].mxu0
    %v235 = vadd.f32 %v149, %v234
    %v236 = vpop.f32.mrb[0].mxu0
    %v237 = vadd.f32 %v145, %v236
    %v238 = vpop.f32.mrb[0].mxu0
    %v239 = vadd.f32 %v149, %v238
    %240 = vmatprep.mubr.bf16.mxu0 0
    %241 = vmatmul.mubr.bf16.gmra.mrb[0].mxu0 %v196
    %v242 = vpop.f32.mrb[0].mxu0
    %v243 = vadd.f32 %v145, %v242
    %v244 = vpop.f32.mrb[0].mxu0
    %v245 = vadd.f32 %v149, %v244
    %v246 = vpop.f32.mrb[0].mxu0
    %v247 = vadd.f32 %v145, %v246
    %v248 = vpop.f32.mrb[0].mxu0
    %v249 = vadd.f32 %v149, %v248
    %250 = vdwg.mxu0
    %v251 = vpack.c.bf16 %v237, %v233
    %v252 = vpack.c.bf16 %v239, %v235
    %v253 = vpack.c.bf16 %v247, %v243
    %v254 = vpack.c.bf16 %v249, %v245
    %v259 = vunpack.c.l.b16 %v251
    %v260 = vunpack.c.l.b16 %v252
    %v261 = vunpack.c.h.b16 %v251
    %v262 = vunpack.c.h.b16 %v252
    %v263 = vunpack.c.l.b16 %v253
    %v264 = vunpack.c.l.b16 %v254
    %v265 = vunpack.c.h.b16 %v253
    %v266 = vunpack.c.h.b16 %v254
    %v267 = vpack.c.b16 %v260, %v259
    %v268 = vpack.c.b16 %v262, %v261
    %v269 = vpack.c.b16 %v264, %v263
    %v270 = vpack.c.b16 %v266, %v265
    %vm275 = vcmask 1043456
    %vm276 = vcmask 523268
    %vm277 = vmor %vm276, %vm275
    %278 = vst.msk [vmem:[#allocation7] sm:$0xff] %vm277, %v267
    %279 = vst.msk [vmem:[#allocation7 + $0x8] sm:$0xff] %vm277, %v268
    %280 = vst.msk [vmem:[#allocation7 + $0x10] sm:$0xff] %vm277, %v269
    %281 = vst.msk [vmem:[#allocation7 + $0x18] sm:$0xff] %vm277, %v270
    // Predicated region
    $region30: #{tpu_custom_call.1} parent=1 // pred_check
      _
    $region31: #{tpu_custom_call.1} parent=1 // pred_check_branch
      %283 = sbr.rel (0) target = $region33
    $region32: #{tpu_custom_call.1} parent=1 // pred_region
      %s285 = ssub.s32 512, 512
      %286 = vsyncadd [#allocation4], %s285
      %s287 = sshll.u32 [#allocation7], 4
      %s288 = int_to_ptr.vmem [resolvable:$true] %s287
      %293 = dma.vmem_to_hbm [thread:$0]  %s288, 512, %s5, [#allocation4], 128, 128, 8
    $region33: #{tpu_custom_call.1} parent=1 // pred_fallthru
      _
    // Predicated region
    $region34: #{tpu_custom_call.1} parent=1 // pred_check
      _
    $region35: #{tpu_custom_call.1} parent=1 // pred_check_branch
      %295 = sbr.rel (0) target = $region37
    $region36: #{tpu_custom_call.1} parent=1 // pred_region
      %296 = dma.done [#allocation4], 512
    $region37: #{tpu_custom_call.1} parent=1 // pred_fallthru
      _
    %297 = vsyncpa [#allocation3], 1
    %298 = vsyncpa [#allocation6], 1
    %299 = vsyncpa [#allocation4], 1

</llo_original>
